<compile_context>
chip_gen: v7x
topology: tpu7x:2x2x1
jax: 0.10.0
libtpu: 0.0.40
codegen_flags: <defaults>
</compile_context>

<pallas_src>
import functools

import jax
import jax.numpy as jnp
from jax import lax
from jax.experimental import pallas as pl
from jax.experimental.pallas import tpu as pltpu


def _round_up(x, m):
    return (x + m - 1) // m * m


def _pick_tile(dim, align, max_tile):
    """Return (padded_dim, tile) with padded_dim % tile == 0 and tile lane/sublane aligned."""
    padded = _round_up(dim, align)
    if padded <= max_tile:
        return padded, padded
    return _round_up(padded, max_tile), max_tile


# --------------------- powerprop reparameterization kernel ---------------------

def _powerprop_kernel(w_ref, o_ref, *, alpha):
    w = w_ref[...]
    aw = jnp.abs(w)
    a = float(alpha)
    if a == 2.0:
        # sign(w) * |w|^2 == w * |w|  -- single VPU multiply, no EUP.
        o_ref[...] = w * aw
    elif a.is_integer() and 1.0 <= a <= 8.0:
        # sign(w) * |w|^n == w * |w|^(n-1) -- repeated VPU multiplies.
        res = w
        for _ in range(int(a) - 1):
            res = res * aw
        o_ref[...] = res
    else:
        # Non-integer alpha: EUP exp/log path (only used when unavoidable).
        o_ref[...] = jnp.sign(w) * jnp.power(aw, jnp.float32(a))


def _powerprop_weight(w_padded, alpha, tn, tk):
    """One-shot tiled reparameterization of the (already padded) weight."""
    Np, Kp = w_padded.shape
    kernel = functools.partial(_powerprop_kernel, alpha=float(alpha))
    is_int = float(alpha).is_integer()
    ce = pl.CostEstimate(
        flops=2 * Np * Kp,
        transcendentals=0 if is_int else 2 * Np * Kp,
        bytes_accessed=2 * Np * Kp * 4,
    )
    return pl.pallas_call(
        kernel,
        out_shape=jax.ShapeDtypeStruct((Np, Kp), w_padded.dtype),
        grid_spec=pltpu.PrefetchScalarGridSpec(
            num_scalar_prefetch=0,
            grid=(Np // tn, Kp // tk),
            in_specs=[pl.BlockSpec((tn, tk), lambda i, j: (i, j))],
            out_specs=pl.BlockSpec((tn, tk), lambda i, j: (i, j)),
        ),
        compiler_params=pltpu.CompilerParams(
            dimension_semantics=("parallel", "parallel"),
        ),
        cost_estimate=ce,
    )(w_padded)


# ------------------------------ matmul kernel ------------------------------

def _matmul_kernel(*refs, has_bias):
    if has_bias:
        x_ref, w_ref, b_ref, o_ref, acc_ref = refs
    else:
        x_ref, w_ref, o_ref, acc_ref = refs
        b_ref = None

    k = pl.program_id(2)

    @pl.when(k == 0)
    def _():
        acc_ref[...] = jnp.zeros_like(acc_ref)

    # x:(tm,tk) contracted with w:(tn,tk) along K -> (tm,tn). Expressing the
    # contraction directly avoids materializing a transposed weight tile.
    acc_ref[...] += lax.dot_general(
        x_ref[...],
        w_ref[...],
        dimension_numbers=(((1,), (1,)), ((), ())),
        preferred_element_type=jnp.float32,
    )

    @pl.when(k == pl.num_programs(2) - 1)
    def _():
        out = acc_ref[...]
        if has_bias:
            out = out + b_ref[...]  # (1, tn) broadcasts over rows
        o_ref[...] = out.astype(o_ref.dtype)


def swat_linear_forward(x, weight, bias, alpha, *, tm_max=256, tn_max=256, tk_max=512):
    """Eval-mode SWATLinear forward: x @ (sign(W)*|W|^alpha).T + bias."""
    B, K = x.shape
    N, K2 = weight.shape
    assert K == K2, "in_features mismatch"

    # Lane-dense padded shapes + tile sizes (budgeted to fit v7x's 64 MiB VMEM
    # with room for double-buffering; also fine on v5e/v6e).
    Mp, tm = _pick_tile(B, 8, tm_max)
    Np, tn = _pick_tile(N, 128, tn_max)
    Kp, tk = _pick_tile(K, 128, tk_max)

    x_p = x if (Mp == B and Kp == K) else jnp.pad(x, ((0, Mp - B), (0, Kp - K)))
    w_p = weight if (Np == N and Kp == K) else jnp.pad(weight, ((0, Np - N), (0, Kp - K)))

    # Hoist powerprop out of the matmul hot loop (weight tiles are re-streamed
    # once per M tile; rework them exactly once instead).
    # NOTE: zero padding is safe for alpha >= 0 (sign(0)*|0|^a == 0); negative
    # alpha would poison padded entries (and is equally ill-defined in torch).
    if float(alpha) != 1.0:
        w_p = _powerprop_weight(w_p, alpha, tn, tk)

    has_bias = bias is not None
    args = [x_p, w_p]
    in_specs = [
        pl.BlockSpec((tm, tk), lambda i, j, k: (i, k)),
        pl.BlockSpec((tn, tk), lambda i, j, k: (j, k)),
    ]
    if has_bias:
        b_p = bias if Np == N else jnp.pad(bias, (0, Np - N))
        args.append(b_p.reshape(1, Np))
        in_specs.append(pl.BlockSpec((1, tn), lambda i, j, k: (0, j)))

    kernel = functools.partial(_matmul_kernel, has_bias=has_bias)

    ce = pl.CostEstimate(
        flops=2 * Mp * Np * Kp,
        transcendentals=0,
        bytes_accessed=(Mp * Kp + Np * Kp + Mp * Np + (Np if has_bias else 0)) * 4,
    )

    out = pl.pallas_call(
        kernel,
        out_shape=jax.ShapeDtypeStruct((Mp, Np), x.dtype),
        grid_spec=pltpu.PrefetchScalarGridSpec(
            num_scalar_prefetch=0,
            grid=(Mp // tm, Np // tn, Kp // tk),
            in_specs=in_specs,
            out_specs=pl.BlockSpec((tm, tn), lambda i, j, k: (i, j)),
            scratch_shapes=[pltpu.VMEM((tm, tn), jnp.float32)],
        ),
        compiler_params=pltpu.CompilerParams(
            dimension_semantics=("parallel", "parallel", "arbitrary"),
            vmem_limit_bytes=32 * 1024 * 1024,
        ),
        cost_estimate=ce,
    )(*args)

    if Mp != B or Np != N:
        out = out[:B, :N]
    return out


if __name__ == "__main__":
    # Module config (synthetic, deterministic init).
    in_features = 32
    out_features = 64
    batch = 8

    key = jax.random.PRNGKey(0)
    kx, kw, kb = jax.random.split(key, 3)
    x = jax.random.normal(kx, (batch, in_features), dtype=jnp.float32)
    weight = jax.random.normal(kw, (out_features, in_features), dtype=jnp.float32) * 0.1
    bias = jax.random.normal(kb, (out_features,), dtype=jnp.float32) * 0.1

    # Case 1: integer alpha (fast VPU powerprop path), with bias.
    alpha = 2.0
    out = swat_linear_forward(x, weight, bias, alpha)
    out = jax.block_until_ready(out)
    pw = jnp.sign(weight) * jnp.power(jnp.abs(weight), alpha)
    ref = x @ pw.T + bias
    assert out.shape == (batch, out_features)
    assert jnp.allclose(out, ref, atol=1e-5, rtol=1e-5), "mismatch vs reference (alpha=2)"

    # Case 2: non-integer alpha (EUP fallback), no bias.
    alpha2 = 1.5
    out2 = swat_linear_forward(x, weight, None, alpha2)
    out2 = jax.block_until_ready(out2)
    pw2 = jnp.sign(weight) * jnp.power(jnp.abs(weight), alpha2)
    ref2 = x @ pw2.T
    assert jnp.allclose(out2, ref2, atol=1e-4, rtol=1e-4), "mismatch vs reference (alpha=1.5)"

    # Case 3: alpha == 1.0 (powerprop kernel skipped entirely), with bias.
    out3 = swat_linear_forward(x, weight, bias, 1.0)
    out3 = jax.block_until_ready(out3)
    ref3 = x @ weight.T + bias
    assert jnp.allclose(out3, ref3, atol=1e-5, rtol=1e-5), "mismatch vs reference (alpha=1)"

    print("KERNEL_OK")
</pallas_src>

<mosaic_0001>
module attributes {stable_mosaic.version = 11 : i64} {
  func.func @_powerprop_kernel(%arg0: i32, %arg1: i32, %arg2: memref<128x128xf32, #tpu.memory_space<vmem>>, %arg3: memref<128x128xf32, #tpu.memory_space<vmem>>) attributes {dimension_semantics = [#tpu.dimension_semantics<parallel>, #tpu.dimension_semantics<parallel>], iteration_bounds = array<i64: 1, 1>, scalar_prefetch = 0 : i64, scratch_operands = 0 : i64, tpu.core_type = #tpu.core_type<tc>, window_params = [{transform_indices = @transform_0, window_bounds = array<i64: 128, 128>}, {transform_indices = @transform_1, window_bounds = array<i64: 128, 128>}]} {
    %c0 = arith.constant 0 : index
    %c0_0 = arith.constant 0 : index
    %0 = vector.load %arg2[%c0, %c0_0] : memref<128x128xf32, #tpu.memory_space<vmem>>, vector<128x128xf32>
    %1 = math.absf %0 : vector<128x128xf32>
    %2 = arith.mulf %0, %1 : vector<128x128xf32>
    %c0_1 = arith.constant 0 : index
    %c0_2 = arith.constant 0 : index
    %3 = vector.load %arg3[%c0_1, %c0_2] : memref<128x128xf32, #tpu.memory_space<vmem>>, vector<128x128xf32>
    tpu.vector_store %arg3[%c0_1, %c0_2], %2 {strides = array<i32>} : memref<128x128xf32, #tpu.memory_space<vmem>>, vector<128x128xf32>,
    return
  }
  func.func @transform_0(%arg0: i32, %arg1: i32) -> (i32, i32) {
    %c0_i32 = arith.constant 0 : i32
    return %arg0, %arg1 : i32, i32
  }
  func.func @transform_1(%arg0: i32, %arg1: i32) -> (i32, i32) {
    %c0_i32 = arith.constant 0 : i32
    return %arg0, %arg1 : i32, i32
  }
}

</mosaic_0001>

<llo_original>
// kernel: tpu_custom_call.1
$region0: #{tpu_custom_call.1}
  #allocation0 [shape = 'u32[]', space=smem, size = 0x4, offset = 0x4, fixed_abs, tag = 'smem constant byte address 0x4 - core index']
  #allocation1 [shape = 'u32[144,128]{1,0:T(1,128)}', space=vmem, size = 0x12000, scoped, tag = 'internal scratch']
  %s0 = inlined_call_operand.hbm [shape: f32[128,128], index: 0, kind: input, shape index: {}]
  %s1 = inlined_call_operand.hbm [shape: f32[128,128], index: 1, kind: output, shape index: {}]
  %s2 = sld [smem:[#allocation0]]
  $region18: #{tpu_custom_call.1} parent=0
    _
  %s4 = ssub.s32 1, %s2
  %s5 = scalar_select 0, %s4, %s2
  $region1: #{tpu_custom_call.1} parent=0
    #allocation2 [shape = 'u8[65536]{0}', space=vmem, size = 0x10000, scoped, tag = 'input window, operand 0, single buffered']
    #allocation3 [shape = 's32[1]{0}', space=sflag, size = 0x4, scoped, tag = 'scoped memory for tpu_custom_call.1']
    #allocation4 [shape = 's32[1]{0}', space=sflag, size = 0x4, scoped, tag = 'scoped memory for tpu_custom_call.1']
    #allocation5 [shape = 'u8[65536]{0}', space=vmem, size = 0x10000, scoped, tag = 'output window, operand 0, single buffered']
    %6 = vsyncpa [#allocation3], 0
    %7 = vsyncpa [#allocation4], 0
    // Predicated region
    $region2: #{tpu_custom_call.1} parent=1 // pred_check
      _
    $region3: #{tpu_custom_call.1} parent=1 // pred_check_branch
      %9 = sbr.rel (0) target = $region5
    $region4: #{tpu_custom_call.1} parent=1 // pred_region
      %s11 = ssub.s32 2048, 2048
      %12 = vsyncadd [#allocation3], %s11
      %s13 = sshll.u32 [#allocation2], 4
      %s14 = int_to_ptr.vmem [resolvable:$true] %s13
      %19 = dma.hbm_to_vmem [thread:$0]  %s0, 2048, %s14, [#allocation3], 128, 128, 8
    $region5: #{tpu_custom_call.1} parent=1 // pred_fallthru
      _
    // Predicated region
    $region6: #{tpu_custom_call.1} parent=1 // pred_check
      _
    $region7: #{tpu_custom_call.1} parent=1 // pred_check_branch
      %21 = sbr.rel (0) target = $region9
    $region8: #{tpu_custom_call.1} parent=1 // pred_region
      %22 = dma.done [#allocation3], 2048
    $region9: #{tpu_custom_call.1} parent=1 // pred_fallthru
      _
    %v23 = vld [vmem:[#allocation2] sm:$0xff]
    %v24 = vld [vmem:[#allocation2 + $0x8] sm:$0xff]
    %v25 = vld [vmem:[#allocation2 + $0x10] sm:$0xff]
    %v26 = vld [vmem:[#allocation2 + $0x18] sm:$0xff]
    %v27 = vld [vmem:[#allocation2 + $0x20] sm:$0xff]
    %v28 = vld [vmem:[#allocation2 + $0x28] sm:$0xff]
    %v29 = vld [vmem:[#allocation2 + $0x30] sm:$0xff]
    %v30 = vld [vmem:[#allocation2 + $0x38] sm:$0xff]
    %v31 = vld [vmem:[#allocation2 + $0x40] sm:$0xff]
    %v32 = vld [vmem:[#allocation2 + $0x48] sm:$0xff]
    %v33 = vld [vmem:[#allocation2 + $0x50] sm:$0xff]
    %v34 = vld [vmem:[#allocation2 + $0x58] sm:$0xff]
    %v35 = vld [vmem:[#allocation2 + $0x60] sm:$0xff]
    %v36 = vld [vmem:[#allocation2 + $0x68] sm:$0xff]
    %v37 = vld [vmem:[#allocation2 + $0x70] sm:$0xff]
    %v38 = vld [vmem:[#allocation2 + $0x78] sm:$0xff]
    %v39 = vand.u32 2147483647, %v23
    %v40 = vand.u32 2147483647, %v24
    %v41 = vand.u32 2147483647, %v25
    %v42 = vand.u32 2147483647, %v26
    %v43 = vand.u32 2147483647, %v27
    %v44 = vand.u32 2147483647, %v28
    %v45 = vand.u32 2147483647, %v29
    %v46 = vand.u32 2147483647, %v30
    %v47 = vand.u32 2147483647, %v31
    %v48 = vand.u32 2147483647, %v32
    %v49 = vand.u32 2147483647, %v33
    %v50 = vand.u32 2147483647, %v34
    %v51 = vand.u32 2147483647, %v35
    %v52 = vand.u32 2147483647, %v36
    %v53 = vand.u32 2147483647, %v37
    %v54 = vand.u32 2147483647, %v38
    %v55 = vmul.f32 %v23, %v39
    %v56 = vmul.f32 %v24, %v40
    %v57 = vmul.f32 %v25, %v41
    %v58 = vmul.f32 %v26, %v42
    %v59 = vmul.f32 %v27, %v43
    %v60 = vmul.f32 %v28, %v44
    %v61 = vmul.f32 %v29, %v45
    %v62 = vmul.f32 %v30, %v46
    %v63 = vmul.f32 %v31, %v47
    %v64 = vmul.f32 %v32, %v48
    %v65 = vmul.f32 %v33, %v49
    %v66 = vmul.f32 %v34, %v50
    %v67 = vmul.f32 %v35, %v51
    %v68 = vmul.f32 %v36, %v52
    %v69 = vmul.f32 %v37, %v53
    %v70 = vmul.f32 %v38, %v54
    %71 = vst [vmem:[#allocation5] sm:$0xff] %v55
    %72 = vst [vmem:[#allocation5 + $0x8] sm:$0xff] %v56
    %73 = vst [vmem:[#allocation5 + $0x10] sm:$0xff] %v57
    %74 = vst [vmem:[#allocation5 + $0x18] sm:$0xff] %v58
    %75 = vst [vmem:[#allocation5 + $0x20] sm:$0xff] %v59
    %76 = vst [vmem:[#allocation5 + $0x28] sm:$0xff] %v60
    %77 = vst [vmem:[#allocation5 + $0x30] sm:$0xff] %v61
    %78 = vst [vmem:[#allocation5 + $0x38] sm:$0xff] %v62
    %79 = vst [vmem:[#allocation5 + $0x40] sm:$0xff] %v63
    %80 = vst [vmem:[#allocation5 + $0x48] sm:$0xff] %v64
    %81 = vst [vmem:[#allocation5 + $0x50] sm:$0xff] %v65
    %82 = vst [vmem:[#allocation5 + $0x58] sm:$0xff] %v66
    %83 = vst [vmem:[#allocation5 + $0x60] sm:$0xff] %v67
    %84 = vst [vmem:[#allocation5 + $0x68] sm:$0xff] %v68
    %85 = vst [vmem:[#allocation5 + $0x70] sm:$0xff] %v69
    %86 = vst [vmem:[#allocation5 + $0x78] sm:$0xff] %v70
    // Predicated region
    $region10: #{tpu_custom_call.1} parent=1 // pred_check
      _
    $region11: #{tpu_custom_call.1} parent=1 // pred_check_branch
      %88 = sbr.rel (0) target = $region13
    $region12: #{tpu_custom_call.1} parent=1 // pred_region
      %s90 = ssub.s32 2048, 2048
      %91 = vsyncadd [#allocation4], %s90
      %s92 = sshll.u32 [#allocation5], 4
      %s93 = int_to_ptr.vmem [resolvable:$true] %s92
      %98 = dma.vmem_to_hbm [thread:$0]  %s93, 2048, %s1, [#allocation4], 128, 128, 8
    $region13: #{tpu_custom_call.1} parent=1 // pred_fallthru
      _
    // Predicated region
    $region14: #{tpu_custom_call.1} parent=1 // pred_check
      _
    $region15: #{tpu_custom_call.1} parent=1 // pred_check_branch
      %100 = sbr.rel (0) target = $region17
    $region16: #{tpu_custom_call.1} parent=1 // pred_region
      %101 = dma.done [#allocation4], 2048
    $region17: #{tpu_custom_call.1} parent=1 // pred_fallthru
      _
    %102 = vsyncpa [#allocation3], 1
    %103 = vsyncpa [#allocation4], 1

</llo_original>
